<compile_context>
chip_gen: v7x
topology: tpu7x:2x2x1
jax: 0.10.0
libtpu: 0.0.40
codegen_flags: <defaults>
</compile_context>

<pallas_src>
import functools

import jax
import jax.numpy as jnp
from jax import lax
from jax.experimental import pallas as pl
from jax.experimental.pallas import tpu as pltpu

_N_CLASSES = 65           # reshape(-1, 3, 65) -> 65 classes per prompt set
_N_PROMPTS = 3            # 3 prompt sets in the stored text features
_LANE = 128               # pad the class dim to the lane width
_TILE_B = 256             # batch tile when pipelining over B


def _head_kernel(scale_ref, feat_ref, text_ref, out_ref, *, compute_dtype):
    """Fused L2-normalize + scaled matmul.

    scale_ref : [1, 1] f32 holding exp(logit_scale) (exp hoisted to wrapper)
    feat_ref  : [tb, D] image features
    text_ref  : [D, N_pad] pre-sliced / pre-transposed / zero-padded text
    out_ref   : [tb, N_pad] f32 logits
    """
    f = feat_ref[...].astype(jnp.float32)
    # scale * (f / ||f||) @ T  ==  (f * (scale * rsqrt(sum f^2))) @ T
    # rsqrt -> EUP slot; no divide, no post-matmul scale multiply.
    ss = jnp.sum(f * f, axis=-1, keepdims=True)
    fn = f * (scale_ref[0, 0] * lax.rsqrt(ss))
    out_ref[...] = lax.dot_general(
        fn.astype(compute_dtype),
        text_ref[...],
        dimension_numbers=(((1,), (0,)), ((), ())),
        preferred_element_type=jnp.float32,
    )


def _prep_text(text_features, src_image, compute_dtype):
    """Slice to the 65 rows actually used, transpose to [D, N], pad N to 128."""
    k = 0 if src_image else 1
    t = text_features[k * _N_CLASSES:(k + 1) * _N_CLASSES]        # [65, D]
    t = jnp.transpose(t).astype(compute_dtype)                    # [D, 65]
    n_pad = pl.cdiv(_N_CLASSES, _LANE) * _LANE                    # 128
    t = jnp.pad(t, ((0, 0), (0, n_pad - _N_CLASSES)))             # [D, 128]
    return t, n_pad


def clip_forward_head(image_features, text_features, logit_scale,
                      src_image=False, compute_dtype=jnp.bfloat16,
                      tile_b=_TILE_B):
    """Pallas implementation of CustomCLIP.forward_head (default return path)."""
    B, D = image_features.shape
    N, D2 = text_features.shape
    assert D == D2, "feature dims must match"
    assert N == _N_PROMPTS * _N_CLASSES, "text_features must hold 3*65 rows"
    assert isinstance(src_image, bool), "src_image must be a static Python bool"

    text_p, n_pad = _prep_text(text_features, src_image, compute_dtype)
    # Hoist the scalar exp out of the kernel.
    scale = jnp.exp(jnp.asarray(logit_scale, jnp.float32)).reshape(1, 1)
    kern = functools.partial(_head_kernel, compute_dtype=compute_dtype)

    if B <= tile_b:
        # Small batch: a single un-gridded call; everything fits in VMEM.
        logits = pl.pallas_call(
            kern,
            out_shape=jax.ShapeDtypeStruct((B, n_pad), jnp.float32),
            in_specs=[
                pl.BlockSpec(memory_space=pltpu.MemorySpace.VMEM),   # scale
                pl.BlockSpec(memory_space=pltpu.MemorySpace.VMEM),   # image feats
                pl.BlockSpec(memory_space=pltpu.MemorySpace.VMEM),   # text [D,128]
            ],
            out_specs=pl.BlockSpec(memory_space=pltpu.MemorySpace.VMEM),
        )(scale, image_features, text_p)
    else:
        # Batched inference: pipeline over B.  The text block index is constant
        # so it stays VMEM-resident across grid steps; the B axis is "parallel"
        # so it can shard across the two TensorCores on v7x.
        bp = pl.cdiv(B, tile_b) * tile_b
        feats = image_features
        if bp != B:
            # Pad with ones (not zeros) so padded rows stay finite; they are
            # sliced off below either way.
            feats = jnp.pad(feats, ((0, bp - B), (0, 0)), constant_values=1.0)
        logits = pl.pallas_call(
            kern,
            out_shape=jax.ShapeDtypeStruct((bp, n_pad), jnp.float32),
            grid=(bp // tile_b,),
            in_specs=[
                pl.BlockSpec((1, 1), lambda i: (0, 0)),           # scale
                pl.BlockSpec((tile_b, D), lambda i: (i, 0)),      # image feats
                pl.BlockSpec((D, n_pad), lambda i: (0, 0)),       # resident text
            ],
            out_specs=pl.BlockSpec((tile_b, n_pad), lambda i: (i, 0)),
            compiler_params=pltpu.CompilerParams(
                dimension_semantics=("parallel",)),
        )(scale, feats, text_p)
        logits = logits[:B]

    # Drop the zero-padded classes (padded columns are 0, not -inf; they must
    # never reach a downstream softmax/argmax).
    return logits[:, :_N_CLASSES]


def custom_clip_forward(image_features, text_features, logit_scale,
                        src_image=False, compute_dtype=jnp.bfloat16):
    """CustomCLIP.forward with the visual encoder stubbed (see TODO above)."""
    return clip_forward_head(image_features, text_features, logit_scale,
                             src_image=src_image, compute_dtype=compute_dtype)


# ----------------------------- references / test -----------------------------

def _reference_head_f32(image_features, text_features, logit_scale,
                        src_image=False):
    """Straight port of the PyTorch forward_head (full-precision matmul)."""
    f = image_features.astype(jnp.float32)
    fn = f / jnp.linalg.norm(f, axis=-1, keepdims=True)
    logits = jnp.exp(logit_scale.reshape(())) * jnp.matmul(
        fn, text_features.T, precision=lax.Precision.HIGHEST)
    logits = logits.reshape(-1, _N_PROMPTS, _N_CLASSES)
    return logits[:, 0, :] if src_image else logits[:, 1, :]


def _reference_head_bf16(image_features, text_features, logit_scale,
                         src_image=False):
    """Mirrors the kernel numerics: f32 normalize w/ folded scale, bf16 MXU ops."""
    k = 0 if src_image else 1
    t = text_features[k * _N_CLASSES:(k + 1) * _N_CLASSES].astype(jnp.bfloat16)
    f = image_features.astype(jnp.float32)
    scale = jnp.exp(logit_scale.reshape(()))
    fn = (f * (scale * lax.rsqrt(jnp.sum(f * f, axis=-1, keepdims=True)))
          ).astype(jnp.bfloat16)
    return jnp.matmul(fn, t.T, preferred_element_type=jnp.float32)


def _check(name, got, want, rtol, atol):
    if got.shape != want.shape:
        raise AssertionError(f"{name}: shape {got.shape} != {want.shape}")
    if not jnp.allclose(got, want, rtol=rtol, atol=atol):
        err = float(jnp.max(jnp.abs(got - want)))
        raise AssertionError(f"{name}: max abs err {err}")


if __name__ == "__main__":
    D = 512                       # output_num for ViT-B/16
    N = _N_PROMPTS * _N_CLASSES   # 195 text/prompt embeddings

    key = jax.random.PRNGKey(0)
    k_feat, k_text, k_feat2 = jax.random.split(key, 3)

    # Deterministic stand-ins for the visual-encoder output and feat_text.pt.
    text_features = jax.random.normal(k_text, (N, D), dtype=jnp.float32)
    logit_scale = jnp.array([jnp.log(1.0 / 0.07)], dtype=jnp.float32)  # CLIP init

    # --- small batch (un-gridded path), default bf16 matmul ---
    B = 4
    image_features = jax.random.normal(k_feat, (B, D), dtype=jnp.float32)
    out = custom_clip_forward(image_features, text_features, logit_scale,
                              src_image=False)
    out = jax.block_until_ready(out)
    if out.shape != (B, _N_CLASSES):
        raise AssertionError(f"unexpected output shape {out.shape}")
    _check("bf16 vs mirrored-bf16 ref", out,
           _reference_head_bf16(image_features, text_features, logit_scale, False),
           rtol=2e-2, atol=5e-2)
    _check("bf16 vs f32 ref (sanity)", out,
           _reference_head_f32(image_features, text_features, logit_scale, False),
           rtol=5e-2, atol=2.5e-1)

    # src_image=True branch (selects prompt set 0).
    out_src = jax.block_until_ready(
        custom_clip_forward(image_features, text_features, logit_scale,
                            src_image=True))
    _check("src_image branch", out_src,
           _reference_head_bf16(image_features, text_features, logit_scale, True),
           rtol=2e-2, atol=5e-2)

    # f32 compute-dtype path (structural check; tolerance covers MXU f32 passes).
    out_f32 = jax.block_until_ready(
        clip_forward_head(image_features, text_features, logit_scale,
                          src_image=False, compute_dtype=jnp.float32))
    _check("f32 compute path", out_f32,
           _reference_head_f32(image_features, text_features, logit_scale, False),
           rtol=2e-2, atol=2.5e-1)

    # --- larger batch exercising the gridded / pipelined path (+ B padding) ---
    B2 = 400
    feats2 = jax.random.normal(k_feat2, (B2, D), dtype=jnp.float32)
    out2 = jax.block_until_ready(
        clip_forward_head(feats2, text_features, logit_scale, src_image=False))
    if out2.shape != (B2, _N_CLASSES):
        raise AssertionError(f"unexpected gridded output shape {out2.shape}")
    _check("gridded bf16 path", out2,
           _reference_head_bf16(feats2, text_features, logit_scale, False),
           rtol=2e-2, atol=5e-2)

    print("KERNEL_OK")
</pallas_src>

<mosaic_0001>
module attributes {stable_mosaic.version = 11 : i64} {
  func.func @_head_kernel(%arg0: memref<1x1xf32, #tpu.memory_space<vmem>>, %arg1: memref<4x512xf32, #tpu.memory_space<vmem>>, %arg2: memref<512x128xbf16, #tpu.memory_space<vmem>>, %arg3: memref<4x128xf32, #tpu.memory_space<vmem>>) attributes {dimension_semantics = [], scalar_prefetch = 0 : i64, scratch_operands = 0 : i64, tpu.core_type = #tpu.core_type<tc>} {
    %c0 = arith.constant 0 : index
    %c0_0 = arith.constant 0 : index
    %0 = vector.load %arg1[%c0, %c0_0] : memref<4x512xf32, #tpu.memory_space<vmem>>, vector<4x512xf32>
    %1 = arith.mulf %0, %0 : vector<4x512xf32>
    %cst = arith.constant dense<0.000000e+00> : vector<4xf32>
    %2 = vector.multi_reduction <add>, %1, %cst [1] : vector<4x512xf32> to vector<4xf32>
    %3 = vector.shape_cast %2 : vector<4xf32> to vector<4x1xf32>
    %c0_1 = arith.constant 0 : index
    %c0_2 = arith.constant 0 : index
    %4 = vector.load %arg0[%c0_1, %c0_2] : memref<1x1xf32, #tpu.memory_space<vmem>>, vector<1x1xf32>
    %5 = vector.extract %4[0, 0] : f32 from vector<1x1xf32>
    %6 = math.rsqrt %3 : vector<4x1xf32>
    %7 = vector.broadcast %5 : f32 to vector<4x1xf32>
    %8 = arith.mulf %7, %6 : vector<4x1xf32>
    %9 = vector.broadcast %8 : vector<4x1xf32> to vector<4x512xf32>
    %10 = arith.mulf %0, %9 : vector<4x512xf32>
    %11 = arith.truncf %10 : vector<4x512xf32> to vector<4x512xbf16>
    %c0_3 = arith.constant 0 : index
    %c0_4 = arith.constant 0 : index
    %12 = vector.load %arg2[%c0_3, %c0_4] : memref<512x128xbf16, #tpu.memory_space<vmem>>, vector<512x128xbf16>
    %cst_5 = arith.constant dense<0.000000e+00> : vector<4x128xf32>
    %13 = tpu.matmul %11, %12, %cst_5 {dimension_numbers = #tpu.dot_dimension_numbers<[1], [0], [0], [1], [0, 0, 1, 1], [], []>} : vector<4x512xbf16>, vector<512x128xbf16>, vector<4x128xf32> -> vector<4x128xf32>
    %c0_6 = arith.constant 0 : index
    %c0_7 = arith.constant 0 : index
    %14 = vector.load %arg3[%c0_6, %c0_7] : memref<4x128xf32, #tpu.memory_space<vmem>>, vector<4x128xf32>
    tpu.vector_store %arg3[%c0_6, %c0_7], %13 {strides = array<i32>} : memref<4x128xf32, #tpu.memory_space<vmem>>, vector<4x128xf32>,
    return
  }
}

</mosaic_0001>

<llo_original>
// kernel: tpu_custom_call.1
$region0: #{tpu_custom_call.1}
  #allocation0 [shape = 'u32[]', space=smem, size = 0x4, offset = 0x4, fixed_abs, tag = 'smem constant byte address 0x4 - core index']
  #allocation1 [shape = 'u32[144,128]{1,0:T(1,128)}', space=vmem, size = 0x12000, scoped, tag = 'internal scratch']
  #allocation2 [shape = 'f32[1,1]{1,0:T(1,128)S(1)}', space=vmem, size = 0x200, scoped, tag = 'scoped memory for tpu_custom_call.1']
  %s0 = inlined_call_operand.<no memory space> [shape: f32[1,1], index: 0, kind: input, shape index: {}]
  %s1 = inlined_call_operand.hbm [shape: f32[4,512], index: 1, kind: input, shape index: {}]
  %s2 = inlined_call_operand.hbm [shape: bf16[512,128], index: 2, kind: input, shape index: {}]
  %s3 = inlined_call_operand.hbm [shape: f32[4,128], index: 3, kind: output, shape index: {}]
  %s4 = sld [smem:[#allocation0]]
  $region30: #{tpu_custom_call.1} parent=0
    _
  %s6 = ssub.s32 1, %s4
  %s7 = scalar_select 0, %s6, %s4
  %v8 = vstv %s0
  %9 = vst [vmem:[#allocation2] sm:$0x1] %v8
  $region1: #{tpu_custom_call.1} parent=0
    #allocation3 [shape = 'u8[8192]{0}', space=vmem, size = 0x2000, scoped, tag = 'input window, operand 1, single buffered']
    #allocation4 [shape = 's32[1]{0}', space=sflag, size = 0x4, scoped, tag = 'scoped memory for tpu_custom_call.1']
    #allocation5 [shape = 's32[1]{0}', space=sflag, size = 0x4, scoped, tag = 'scoped memory for tpu_custom_call.1']
    #allocation6 [shape = 'u8[131072]{0}', space=vmem, size = 0x20000, scoped, tag = 'input window, operand 2, single buffered']
    #allocation7 [shape = 's32[1]{0}', space=sflag, size = 0x4, scoped, tag = 'scoped memory for tpu_custom_call.1']
    #allocation8 [shape = 'u8[2048]{0}', space=vmem, size = 0x800, scoped, tag = 'output window, operand 0, single buffered']
    %10 = vsyncpa [#allocation4], 0
    %11 = vsyncpa [#allocation7], 0
    %12 = vsyncpa [#allocation5], 0
    // Predicated region
    $region2: #{tpu_custom_call.1} parent=1 // pred_check
      _
    $region3: #{tpu_custom_call.1} parent=1 // pred_check_branch
      %14 = sbr.rel (0) target = $region5
    $region4: #{tpu_custom_call.1} parent=1 // pred_region
      _
    $region5: #{tpu_custom_call.1} parent=1 // pred_fallthru
      _
    // Predicated region
    $region6: #{tpu_custom_call.1} parent=1 // pred_check
      _
    $region7: #{tpu_custom_call.1} parent=1 // pred_check_branch
      %16 = sbr.rel (0) target = $region9
    $region8: #{tpu_custom_call.1} parent=1 // pred_region
      %s18 = ssub.s32 256, 256
      %19 = vsyncadd [#allocation4], %s18
      %s21 = sshll.u32 [#allocation3], 4
      %s22 = int_to_ptr.vmem [resolvable:$true] %s21
      %24 = dma.hbm_to_vmem [thread:$0]  %s1, 256, %s22, [#allocation4]
    $region9: #{tpu_custom_call.1} parent=1 // pred_fallthru
      _
    // Predicated region
    $region10: #{tpu_custom_call.1} parent=1 // pred_check
      _
    $region11: #{tpu_custom_call.1} parent=1 // pred_check_branch
      %26 = sbr.rel (0) target = $region13
    $region12: #{tpu_custom_call.1} parent=1 // pred_region
      %s28 = ssub.s32 4096, 4096
      %29 = vsyncadd [#allocation7], %s28
      %s30 = sshll.u32 [#allocation6], 4
      %s31 = int_to_ptr.vmem [resolvable:$true] %s30
      %36 = dma.hbm_to_vmem [thread:$0]  %s2, 4096, %s31, [#allocation7], 64, 64, 4
    $region13: #{tpu_custom_call.1} parent=1 // pred_fallthru
      _
    // Predicated region
    $region14: #{tpu_custom_call.1} parent=1 // pred_check
      _
    $region15: #{tpu_custom_call.1} parent=1 // pred_check_branch
      %38 = sbr.rel (0) target = $region17
    $region16: #{tpu_custom_call.1} parent=1 // pred_region
      %39 = dma.done [#allocation4], 256
    $region17: #{tpu_custom_call.1} parent=1 // pred_fallthru
      _
    // Predicated region
    $region18: #{tpu_custom_call.1} parent=1 // pred_check
      _
    $region19: #{tpu_custom_call.1} parent=1 // pred_check_branch
      %41 = sbr.rel (0) target = $region21
    $region20: #{tpu_custom_call.1} parent=1 // pred_region
      %42 = dma.done [#allocation7], 4096
    $region21: #{tpu_custom_call.1} parent=1 // pred_fallthru
      _
    %v44 = vld [vmem:[#allocation3] sm:$0xff]
    %v45 = vld [vmem:[#allocation3 + $0x8] sm:$0xff]
    %v46 = vmul.f32 %v44, %v44
    %v47 = vmul.f32 %v45, %v45
    %v50 = vcombine.high %v46, %v46
    %v51 = vcombine.high %v47, %v47
    %vm54 = vcmask 1043456
    %v55 = vsel %vm54, %v46, 0.0
    %v56 = vsel %vm54, %v50, 0.0
    %v57 = vadd.f32 %v55, %v56
    %v58 = vsel %vm54, %v47, 0.0
    %v59 = vadd.f32 %v57, %v58
    %v60 = vsel %vm54, %v51, 0.0
    %v61 = vadd.f32 %v59, %v60
    %62 = vadd.xlane.f32.xlu0 %v61
    %v63 = vpop.xlane.xlu0 %62
    %v64 = vld [vmem:[#allocation2] sm:$0x1]
    %s65 = vtos %v64
    %v66 = vrsqrt.pop %v63
    %v67 = vstv %s65
    %v68 = vmul.f32 %v67, %v66
    %v71 = vunpack.c.l.s4 839922192
    %v72 = vunpack.c.0.s8 %v71
    %v73 = vlaneseq
    %v74 = vshrl.u32 %v73, 7
    %v75 = vsub.s32 %v72, %v74
    %v76 = vrot.slane %v68, %v75
    %v78 = vmul.f32 %v44, %v76
    %v79 = vmul.f32 %v45, %v76
    %v82 = vcombine.high %v78, %v78
    %v83 = vcombine.high %v79, %v79
    %v86 = vpack.c.bf16 %v78, %v78
    %v87 = vpack.c.bf16 %v82, %v82
    %v88 = vpack.c.bf16 %v79, %v79
    %v89 = vpack.c.bf16 %v83, %v83
    %v90 = vld [vmem:[#allocation6] sm:$0xf]
    %v91 = vld [vmem:[#allocation6 + $0x4] sm:$0xf]
    %v92 = vld [vmem:[#allocation6 + $0x8] sm:$0xf]
    %v93 = vld [vmem:[#allocation6 + $0xc] sm:$0xf]
    %v94 = vld [vmem:[#allocation6 + $0x10] sm:$0xf]
    %v95 = vld [vmem:[#allocation6 + $0x14] sm:$0xf]
    %v96 = vld [vmem:[#allocation6 + $0x18] sm:$0xf]
    %v97 = vld [vmem:[#allocation6 + $0x1c] sm:$0xf]
    %v98 = vld [vmem:[#allocation6 + $0x20] sm:$0xf]
    %v99 = vld [vmem:[#allocation6 + $0x24] sm:$0xf]
    %v100 = vld [vmem:[#allocation6 + $0x28] sm:$0xf]
    %v101 = vld [vmem:[#allocation6 + $0x2c] sm:$0xf]
    %v102 = vld [vmem:[#allocation6 + $0x30] sm:$0xf]
    %v103 = vld [vmem:[#allocation6 + $0x34] sm:$0xf]
    %v104 = vld [vmem:[#allocation6 + $0x38] sm:$0xf]
    %v105 = vld [vmem:[#allocation6 + $0x3c] sm:$0xf]
    %v106 = vld [vmem:[#allocation6 + $0x40] sm:$0xf]
    %v107 = vld [vmem:[#allocation6 + $0x44] sm:$0xf]
    %v108 = vld [vmem:[#allocation6 + $0x48] sm:$0xf]
    %v109 = vld [vmem:[#allocation6 + $0x4c] sm:$0xf]
    %v110 = vld [vmem:[#allocation6 + $0x50] sm:$0xf]
    %v111 = vld [vmem:[#allocation6 + $0x54] sm:$0xf]
    %v112 = vld [vmem:[#allocation6 + $0x58] sm:$0xf]
    %v113 = vld [vmem:[#allocation6 + $0x5c] sm:$0xf]
    %v114 = vld [vmem:[#allocation6 + $0x60] sm:$0xf]
    %v115 = vld [vmem:[#allocation6 + $0x64] sm:$0xf]
    %v116 = vld [vmem:[#allocation6 + $0x68] sm:$0xf]
    %v117 = vld [vmem:[#allocation6 + $0x6c] sm:$0xf]
    %v118 = vld [vmem:[#allocation6 + $0x70] sm:$0xf]
    %v119 = vld [vmem:[#allocation6 + $0x74] sm:$0xf]
    %v120 = vld [vmem:[#allocation6 + $0x78] sm:$0xf]
    %v121 = vld [vmem:[#allocation6 + $0x7c] sm:$0xf]
    %v122 = vld [vmem:[#allocation6 + $0x80] sm:$0xf]
    %v123 = vld [vmem:[#allocation6 + $0x84] sm:$0xf]
    %v124 = vld [vmem:[#allocation6 + $0x88] sm:$0xf]
    %v125 = vld [vmem:[#allocation6 + $0x8c] sm:$0xf]
    %v126 = vld [vmem:[#allocation6 + $0x90] sm:$0xf]
    %v127 = vld [vmem:[#allocation6 + $0x94] sm:$0xf]
    %v128 = vld [vmem:[#allocation6 + $0x98] sm:$0xf]
    %v129 = vld [vmem:[#allocation6 + $0x9c] sm:$0xf]
    %v130 = vld [vmem:[#allocation6 + $0xa0] sm:$0xf]
    %v131 = vld [vmem:[#allocation6 + $0xa4] sm:$0xf]
    %v132 = vld [vmem:[#allocation6 + $0xa8] sm:$0xf]
    %v133 = vld [vmem:[#allocation6 + $0xac] sm:$0xf]
    %v134 = vld [vmem:[#allocation6 + $0xb0] sm:$0xf]
    %v135 = vld [vmem:[#allocation6 + $0xb4] sm:$0xf]
    %v136 = vld [vmem:[#allocation6 + $0xb8] sm:$0xf]
    %v137 = vld [vmem:[#allocation6 + $0xbc] sm:$0xf]
    %v138 = vld [vmem:[#allocation6 + $0xc0] sm:$0xf]
    %v139 = vld [vmem:[#allocation6 + $0xc4] sm:$0xf]
    %v140 = vld [vmem:[#allocation6 + $0xc8] sm:$0xf]
    %v141 = vld [vmem:[#allocation6 + $0xcc] sm:$0xf]
    %v142 = vld [vmem:[#allocation6 + $0xd0] sm:$0xf]
    %v143 = vld [vmem:[#allocation6 + $0xd4] sm:$0xf]
    %v144 = vld [vmem:[#allocation6 + $0xd8] sm:$0xf]
    %v145 = vld [vmem:[#allocation6 + $0xdc] sm:$0xf]
    %v146 = vld [vmem:[#allocation6 + $0xe0] sm:$0xf]
    %v147 = vld [vmem:[#allocation6 + $0xe4] sm:$0xf]
    %v148 = vld [vmem:[#allocation6 + $0xe8] sm:$0xf]
    %v149 = vld [vmem:[#allocation6 + $0xec] sm:$0xf]
    %v150 = vld [vmem:[#allocation6 + $0xf0] sm:$0xf]
    %v151 = vld [vmem:[#allocation6 + $0xf4] sm:$0xf]
    %v152 = vld [vmem:[#allocation6 + $0xf8] sm:$0xf]
    %v153 = vld [vmem:[#allocation6 + $0xfc] sm:$0xf]
    %v218 = vunpack.c.l.b16 %v90
    %v219 = vunpack.c.l.b16 %v91
    %v220 = vunpack.c.l.b16 %v92
    %v221 = vunpack.c.l.b16 %v93
    %v222 = vunpack.c.l.b16 %v94
    %v223 = vunpack.c.l.b16 %v95
    %v224 = vunpack.c.l.b16 %v96
    %v225 = vunpack.c.l.b16 %v97
    %v226 = vunpack.c.l.b16 %v98
    %v227 = vunpack.c.l.b16 %v99
    %v228 = vunpack.c.l.b16 %v100
    %v229 = vunpack.c.l.b16 %v101
    %v230 = vunpack.c.l.b16 %v102
    %v231 = vunpack.c.l.b16 %v103
    %v232 = vunpack.c.l.b16 %v104
    %v233 = vunpack.c.l.b16 %v105
    %v234 = vunpack.c.l.b16 %v106
    %v235 = vunpack.c.l.b16 %v107
    %v236 = vunpack.c.l.b16 %v108
    %v237 = vunpack.c.l.b16 %v109
    %v238 = vunpack.c.l.b16 %v110
    %v239 = vunpack.c.l.b16 %v111
    %v240 = vunpack.c.l.b16 %v112
    %v241 = vunpack.c.l.b16 %v113
    %v242 = vunpack.c.l.b16 %v114
    %v243 = vunpack.c.l.b16 %v115
    %v244 = vunpack.c.l.b16 %v116
    %v245 = vunpack.c.l.b16 %v117
    %v246 = vunpack.c.l.b16 %v118
    %v247 = vunpack.c.l.b16 %v119
    %v248 = vunpack.c.l.b16 %v120
    %v249 = vunpack.c.l.b16 %v121
    %v250 = vunpack.c.l.b16 %v122
    %v251 = vunpack.c.l.b16 %v123
    %v252 = vunpack.c.l.b16 %v124
    %v253 = vunpack.c.l.b16 %v125
    %v254 = vunpack.c.l.b16 %v126
    %v255 = vunpack.c.l.b16 %v127
    %v256 = vunpack.c.l.b16 %v128
    %v257 = vunpack.c.l.b16 %v129
    %v258 = vunpack.c.l.b16 %v130
    %v259 = vunpack.c.l.b16 %v131
    %v260 = vunpack.c.l.b16 %v132
    %v261 = vunpack.c.l.b16 %v133
    %v262 = vunpack.c.l.b16 %v134
    %v263 = vunpack.c.l.b16 %v135
    %v264 = vunpack.c.l.b16 %v136
    %v265 = vunpack.c.l.b16 %v137
    %v266 = vunpack.c.l.b16 %v138
    %v267 = vunpack.c.l.b16 %v139
    %v268 = vunpack.c.l.b16 %v140
    %v269 = vunpack.c.l.b16 %v141
    %v270 = vunpack.c.l.b16 %v142
    %v271 = vunpack.c.l.b16 %v143
    %v272 = vunpack.c.l.b16 %v144
    %v273 = vunpack.c.l.b16 %v145
    %v274 = vunpack.c.l.b16 %v146
    %v275 = vunpack.c.l.b16 %v147
    %v276 = vunpack.c.l.b16 %v148
    %v277 = vunpack.c.l.b16 %v149
    %v278 = vunpack.c.l.b16 %v150
    %v279 = vunpack.c.l.b16 %v151
    %v280 = vunpack.c.l.b16 %v152
    %v281 = vunpack.c.l.b16 %v153
    %v282 = vpack.c.b16 %v219, %v218
    %v283 = vpack.c.b16 %v221, %v220
    %v284 = vpack.c.b16 %v223, %v222
    %v285 = vpack.c.b16 %v225, %v224
    %v286 = vpack.c.b16 %v227, %v226
    %v287 = vpack.c.b16 %v229, %v228
    %v288 = vpack.c.b16 %v231, %v230
    %v289 = vpack.c.b16 %v233, %v232
    %v290 = vpack.c.b16 %v235, %v234
    %v291 = vpack.c.b16 %v237, %v236
    %v292 = vpack.c.b16 %v239, %v238
    %v293 = vpack.c.b16 %v241, %v240
    %v294 = vpack.c.b16 %v243, %v242
    %v295 = vpack.c.b16 %v245, %v244
    %v296 = vpack.c.b16 %v247, %v246
    %v297 = vpack.c.b16 %v249, %v248
    %v298 = vpack.c.b16 %v251, %v250
    %v299 = vpack.c.b16 %v253, %v252
    %v300 = vpack.c.b16 %v255, %v254
    %v301 = vpack.c.b16 %v257, %v256
    %v302 = vpack.c.b16 %v259, %v258
    %v303 = vpack.c.b16 %v261, %v260
    %v304 = vpack.c.b16 %v263, %v262
    %v305 = vpack.c.b16 %v265, %v264
    %v306 = vpack.c.b16 %v267, %v266
    %v307 = vpack.c.b16 %v269, %v268
    %v308 = vpack.c.b16 %v271, %v270
    %v309 = vpack.c.b16 %v273, %v272
    %v310 = vpack.c.b16 %v275, %v274
    %v311 = vpack.c.b16 %v277, %v276
    %v312 = vpack.c.b16 %v279, %v278
    %v313 = vpack.c.b16 %v281, %v280
    %346 = vmatprep.subr.bf16.mxu0 0
    %347 = vmatpush1.bf16.msra.mxu0 %v282
    %348 = vmatprep.subr.bf16.mxu0 0
    %349 = vmatpush1.bf16.msra.mxu0 %v283
    %350 = vmatprep.subr.bf16.mxu0 0
    %351 = vmatpush1.bf16.msra.mxu0 %v284
    %352 = vmatprep.subr.bf16.mxu0 0
    %353 = vmatpush1.bf16.msra.mxu0 %v285
    %354 = vmatprep.subr.bf16.mxu0 0
    %355 = vmatpush1.bf16.msra.mxu0 %v286
    %356 = vmatprep.subr.bf16.mxu0 0
    %357 = vmatpush1.bf16.msra.mxu0 %v287
    %358 = vmatprep.subr.bf16.mxu0 0
    %359 = vmatpush1.bf16.msra.mxu0 %v288
    %360 = vmatprep.subr.bf16.mxu0 0
    %361 = vmatpush1.bf16.msra.mxu0 %v289
    %362 = vmatprep.subr.bf16.mxu0 0
    %363 = vmatpush1.bf16.msra.mxu0 %v290
    %364 = vmatprep.subr.bf16.mxu0 0
    %365 = vmatpush1.bf16.msra.mxu0 %v291
    %366 = vmatprep.subr.bf16.mxu0 0
    %367 = vmatpush1.bf16.msra.mxu0 %v292
    %368 = vmatprep.subr.bf16.mxu0 0
    %369 = vmatpush1.bf16.msra.mxu0 %v293
    %370 = vmatprep.subr.bf16.mxu0 0
    %371 = vmatpush1.bf16.msra.mxu0 %v294
    %372 = vmatprep.subr.bf16.mxu0 0
    %373 = vmatpush1.bf16.msra.mxu0 %v295
    %374 = vmatprep.subr.bf16.mxu0 0
    %375 = vmatpush1.bf16.msra.mxu0 %v296
    %376 = vmatprep.subr.bf16.mxu0 0
    %377 = vmatpush1.bf16.msra.mxu0 %v297
    %378 = vmatprep.mubr.bf16.mxu0 %v87
    %379 = vmatmul.mubr.bf16.gmra.mrb[0].mxu0 %v86
    %v380 = vpop.f32.mrb[0].mxu0
    %v381 = vadd.f32 0.0, %v380
    %v382 = vpop.f32.mrb[0].mxu0
    %v383 = vpop.f32.mrb[0].mxu0
    %v384 = vpop.f32.mrb[0].mxu0
    %385 = vdwg.mxu0
    %386 = vmatprep.subr.bf16.mxu0 0
    %387 = vmatpush1.bf16.msra.mxu0 %v298
    %388 = vmatprep.subr.bf16.mxu0 0
    %389 = vmatpush1.bf16.msra.mxu0 %v299
    %390 = vmatprep.subr.bf16.mxu0 0
    %391 = vmatpush1.bf16.msra.mxu0 %v300
    %392 = vmatprep.subr.bf16.mxu0 0
    %393 = vmatpush1.bf16.msra.mxu0 %v301
    %394 = vmatprep.subr.bf16.mxu0 0
    %395 = vmatpush1.bf16.msra.mxu0 %v302
    %396 = vmatprep.subr.bf16.mxu0 0
    %397 = vmatpush1.bf16.msra.mxu0 %v303
    %398 = vmatprep.subr.bf16.mxu0 0
    %399 = vmatpush1.bf16.msra.mxu0 %v304
    %400 = vmatprep.subr.bf16.mxu0 0
    %401 = vmatpush1.bf16.msra.mxu0 %v305
    %402 = vmatprep.subr.bf16.mxu0 0
    %403 = vmatpush1.bf16.msra.mxu0 %v306
    %404 = vmatprep.subr.bf16.mxu0 0
    %405 = vmatpush1.bf16.msra.mxu0 %v307
    %406 = vmatprep.subr.bf16.mxu0 0
    %407 = vmatpush1.bf16.msra.mxu0 %v308
    %408 = vmatprep.subr.bf16.mxu0 0
    %409 = vmatpush1.bf16.msra.mxu0 %v309
    %410 = vmatprep.subr.bf16.mxu0 0
    %411 = vmatpush1.bf16.msra.mxu0 %v310
    %412 = vmatprep.subr.bf16.mxu0 0
    %413 = vmatpush1.bf16.msra.mxu0 %v311
    %414 = vmatprep.subr.bf16.mxu0 0
    %415 = vmatpush1.bf16.msra.mxu0 %v312
    %416 = vmatprep.subr.bf16.mxu0 0
    %417 = vmatpush1.bf16.msra.mxu0 %v313
    %418 = vmatprep.mubr.bf16.mxu0 %v89
    %419 = vmatmul.mubr.bf16.gmra.mrb[0].mxu0 %v88
    %v420 = vpop.f32.mrb[0].mxu0
    %v421 = vadd.f32 %v381, %v420
    %v422 = vpop.f32.mrb[0].mxu0
    %v423 = vpop.f32.mrb[0].mxu0
    %v424 = vpop.f32.mrb[0].mxu0
    %425 = vdwg.mxu0
    %426 = vst [vmem:[#allocation8] sm:$0xf] %v421
    // Predicated region
    $region22: #{tpu_custom_call.1} parent=1 // pred_check
      _
    $region23: #{tpu_custom_call.1} parent=1 // pred_check_branch
      %428 = sbr.rel (0) target = $region25
    $region24: #{tpu_custom_call.1} parent=1 // pred_region
      %s430 = ssub.s32 64, 64
      %431 = vsyncadd [#allocation5], %s430
      %s433 = sshll.u32 [#allocation8], 4
      %s434 = int_to_ptr.vmem [resolvable:$true] %s433
      %436 = dma.vmem_to_hbm [thread:$0]  %s434, 64, %s3, [#allocation5]
    $region25: #{tpu_custom_call.1} parent=1 // pred_fallthru
      _
    // Predicated region
    $region26: #{tpu_custom_call.1} parent=1 // pred_check
      _
    $region27: #{tpu_custom_call.1} parent=1 // pred_check_branch
      %438 = sbr.rel (0) target = $region29
    $region28: #{tpu_custom_call.1} parent=1 // pred_region
      %439 = dma.done [#allocation5], 64
    $region29: #{tpu_custom_call.1} parent=1 // pred_fallthru
      _
    %440 = vsyncpa [#allocation4], 1
    %441 = vsyncpa [#allocation7], 1
    %442 = vsyncpa [#allocation5], 1

</llo_original>
